<compile_context>
chip_gen: v5e
topology: v5e:2x2
jax: 0.10.0
libtpu: 0.0.40
codegen_flags: <defaults>
</compile_context>

<pallas_src>
import jax
import jax.numpy as jnp
from jax import lax
from jax.experimental import pallas as pl
from jax.experimental.pallas import tpu as pltpu


def rot_head_kernel(x_ref, w_ref, b_ref, o_ref):
    # x_ref: (Nb, C)      rows of the fused (B*T) axis for this grid step
    # w_ref: (c_out, C)   1x1 conv weight (kernel dim squeezed), resident
    # b_ref: (c_out, 1)   bias, broadcasts along the lane axis
    # o_ref: (c_out, Nb)  output tile, already in the final NCW-ish orientation
    y = lax.dot_general(
        w_ref[...], x_ref[...],
        dimension_numbers=(((1,), (1,)), ((), ())),   # contract over C (trans_b)
        preferred_element_type=jnp.float32,
    )                                                  # (c_out, Nb) on the MXU
    o_ref[...] = (y + b_ref[...]).astype(o_ref.dtype)  # VPU bias add, lane-dense store


def rot_head_forward(x, w, b, dim=3, block_n=512):
    """x: (B, T, C) float32; w: (dim*dim, C); b: (dim*dim,). Returns (B, T, dim, dim)."""
    B, T, C = x.shape
    c_out = dim * dim
    N = B * T

    x2d = x.reshape(N, C)           # free: (B, T, C) is row-major contiguous
    b2d = b.reshape(c_out, 1)

    # Lane-dense tiling of the fused B*T axis; fall back to a single full-extent
    # block when N is small or does not divide evenly (toy shapes).
    if N < block_n or N % block_n != 0:
        block_n = N
    grid = (N // block_n,)

    y = pl.pallas_call(
        rot_head_kernel,
        out_shape=jax.ShapeDtypeStruct((c_out, N), jnp.float32),
        grid=grid,
        in_specs=[
            pl.BlockSpec((block_n, C), lambda i: (i, 0)),   # x rows for this tile
            pl.BlockSpec((c_out, C), lambda i: (0, 0)),     # weight: resident
            pl.BlockSpec((c_out, 1), lambda i: (0, 0)),     # bias: resident
        ],
        out_specs=pl.BlockSpec((c_out, block_n), lambda i: (0, i)),
        compiler_params=pltpu.CompilerParams(
            dimension_semantics=("parallel",)),
    )(x2d, w, b2d)

    # Un-pack the fused lane axis back to per-batch (B, c_out, T) (pure layout
    # plumbing outside the kernel), then apply the raw reshape that matches
    # torch's .view(B, -1, dim, dim) on the contiguous (B, c_out, T) tensor.
    y = y.reshape(c_out, B, T).transpose(1, 0, 2)           # (B, c_out, T)
    return y.reshape(B, -1, dim, dim)


def rot_head_reference(x, w, b, dim=3):
    # Pure-JAX reference mirroring the PyTorch forward.
    B, T, C = x.shape
    xt = jnp.transpose(x, (0, 2, 1))                           # (B, C, T)
    y = jnp.einsum("oc,bct->bot", w, xt) + b[None, :, None]    # (B, c_out, T)
    return y.reshape(B, -1, dim, dim)


if __name__ == "__main__":
    # Module config: in_channels=10 -> channels=10, dim=3 -> Conv1d(10, 9, 1, bias=True)
    B, T, C, dim = 2, 16, 10, 3
    c_out = dim * dim

    key = jax.random.PRNGKey(0)
    kx, kw, kb = jax.random.split(key, 3)
    x = jax.random.normal(kx, (B, T, C), dtype=jnp.float32)
    # Deterministic synthetic parameters (Conv1d weight (9, 10, 1) with k-dim squeezed).
    w = jax.random.normal(kw, (c_out, C), dtype=jnp.float32) * 0.1
    b = jax.random.normal(kb, (c_out,), dtype=jnp.float32) * 0.1

    out = rot_head_forward(x, w, b, dim=dim)
    out = jax.block_until_ready(out)

    ref = rot_head_reference(x, w, b, dim=dim)
    assert out.shape == (B, T, dim, dim), out.shape
    assert jnp.allclose(out, ref, atol=1e-5, rtol=1e-5), "mismatch vs reference"

    print("KERNEL_OK")
</pallas_src>

<mosaic_0001>
module attributes {stable_mosaic.version = 11 : i64} {
  func.func @rot_head_kernel(%arg0: i32, %arg1: memref<32x10xf32, #tpu.memory_space<vmem>>, %arg2: memref<9x10xf32, #tpu.memory_space<vmem>>, %arg3: memref<9x1xf32, #tpu.memory_space<vmem>>, %arg4: memref<9x32xf32, #tpu.memory_space<vmem>>) attributes {dimension_semantics = [#tpu.dimension_semantics<parallel>], iteration_bounds = array<i64: 1>, scalar_prefetch = 0 : i64, scratch_operands = 0 : i64, tpu.core_type = #tpu.core_type<tc>, window_params = [{transform_indices = @transform_0, window_bounds = array<i64: 32, 10>}, {pipeline_mode = #tpu.pipeline_mode<synchronous>, transform_indices = @transform_1, window_bounds = array<i64: 9, 10>}, {pipeline_mode = #tpu.pipeline_mode<synchronous>, transform_indices = @transform_2, window_bounds = array<i64: 9, 1>}, {transform_indices = @transform_3, window_bounds = array<i64: 9, 32>}]} {
    %c0 = arith.constant 0 : index
    %c0_0 = arith.constant 0 : index
    %0 = vector.load %arg2[%c0, %c0_0] : memref<9x10xf32, #tpu.memory_space<vmem>>, vector<9x10xf32>
    %c0_1 = arith.constant 0 : index
    %c0_2 = arith.constant 0 : index
    %1 = vector.load %arg1[%c0_1, %c0_2] : memref<32x10xf32, #tpu.memory_space<vmem>>, vector<32x10xf32>
    %cst = arith.constant dense<0.000000e+00> : vector<9x32xf32>
    %2 = tpu.matmul %0, %1, %cst {dimension_numbers = #tpu.dot_dimension_numbers<[1], [1], [0], [0], [0, 0, 1, 0], [], []>} : vector<9x10xf32>, vector<32x10xf32>, vector<9x32xf32> -> vector<9x32xf32>
    %c0_3 = arith.constant 0 : index
    %c0_4 = arith.constant 0 : index
    %3 = vector.load %arg3[%c0_3, %c0_4] : memref<9x1xf32, #tpu.memory_space<vmem>>, vector<9x1xf32>
    %4 = vector.broadcast %3 : vector<9x1xf32> to vector<9x32xf32>
    %5 = arith.addf %2, %4 : vector<9x32xf32>
    %c0_5 = arith.constant 0 : index
    %c0_6 = arith.constant 0 : index
    %6 = vector.load %arg4[%c0_5, %c0_6] : memref<9x32xf32, #tpu.memory_space<vmem>>, vector<9x32xf32>
    tpu.vector_store %arg4[%c0_5, %c0_6], %5 {strides = array<i32>} : memref<9x32xf32, #tpu.memory_space<vmem>>, vector<9x32xf32>,
    return
  }
  func.func @transform_0(%arg0: i32) -> (i32, i32) {
    %c0_i32 = arith.constant 0 : i32
    %c0_i32_0 = arith.constant 0 : i32
    return %arg0, %c0_i32 : i32, i32
  }
  func.func @transform_1(%arg0: i32) -> (i32, i32) {
    %c0_i32 = arith.constant 0 : i32
    %c0_i32_0 = arith.constant 0 : i32
    %c0_i32_1 = arith.constant 0 : i32
    return %c0_i32, %c0_i32_0 : i32, i32
  }
  func.func @transform_2(%arg0: i32) -> (i32, i32) {
    %c0_i32 = arith.constant 0 : i32
    %c0_i32_0 = arith.constant 0 : i32
    %c0_i32_1 = arith.constant 0 : i32
    return %c0_i32, %c0_i32_0 : i32, i32
  }
  func.func @transform_3(%arg0: i32) -> (i32, i32) {
    %c0_i32 = arith.constant 0 : i32
    %c0_i32_0 = arith.constant 0 : i32
    return %c0_i32, %arg0 : i32, i32
  }
}

</mosaic_0001>

<llo_original>
// kernel: tpu_custom_call.1
$region0: #{tpu_custom_call.1}
  #allocation0 [shape = 'u32[]', space=smem, size = 0x4, offset = 0x4, fixed_abs, tag = 'smem constant byte address 0x4 - core index']
  #allocation1 [shape = 'u32[72,128]{1,0:T(1,128)}', space=vmem, size = 0x9000, scoped, tag = 'internal scratch']
  %s0 = inlined_call_operand.vmem [shape: f32[32,10], index: 0, kind: input, shape index: {}]
  %s1 = inlined_call_operand.vmem [shape: f32[9,10], index: 1, kind: input, shape index: {}]
  %s2 = inlined_call_operand.vmem [shape: f32[9,1], index: 2, kind: input, shape index: {}]
  %s3 = inlined_call_operand.hbm [shape: f32[9,32], index: 3, kind: output, shape index: {}]
  %s4 = sld [smem:[#allocation0]]
  $region22: #{tpu_custom_call.1} parent=0
    _
  %s6 = ssub.s32 1, %s4
  %s7 = scalar_select 0, %s6, %s4
  $region1: #{tpu_custom_call.1} parent=0
    #allocation2 [shape = 'u8[8192]{0}', space=vmem, size = 0x2000, scoped, tag = 'output window, operand 0, single buffered']
    #allocation3 [shape = 's32[1]{0}', space=sflag, size = 0x4, scoped, tag = 'scoped memory for tpu_custom_call.1']
    %8 = vsyncpa [#allocation3], 0
    // Predicated region
    $region2: #{tpu_custom_call.1} parent=1 // pred_check
      _
    $region3: #{tpu_custom_call.1} parent=1 // pred_check_branch
      %10 = sbr.rel (0) target = $region5
    $region4: #{tpu_custom_call.1} parent=1 // pred_region
      _
    $region5: #{tpu_custom_call.1} parent=1 // pred_fallthru
      _
    // Predicated region
    $region6: #{tpu_custom_call.1} parent=1 // pred_check
      _
    $region7: #{tpu_custom_call.1} parent=1 // pred_check_branch
      %12 = sbr.rel (0) target = $region9
    $region8: #{tpu_custom_call.1} parent=1 // pred_region
      _
    $region9: #{tpu_custom_call.1} parent=1 // pred_fallthru
      _
    // Predicated region
    $region10: #{tpu_custom_call.1} parent=1 // pred_check
      _
    $region11: #{tpu_custom_call.1} parent=1 // pred_check_branch
      %14 = sbr.rel (0) target = $region13
    $region12: #{tpu_custom_call.1} parent=1 // pred_region
      _
    $region13: #{tpu_custom_call.1} parent=1 // pred_fallthru
      _
    %v15 = vld [vmem:[%s1] sm:$0xff]
    %v16 = vld [vmem:[%s1 + $0x8] sm:$0x1]
    %v17 = vld [vmem:[%s0] sm:$0xff]
    %v18 = vld [vmem:[%s0 + $0x8] sm:$0xff]
    %v19 = vld [vmem:[%s0 + $0x10] sm:$0xff]
    %v20 = vld [vmem:[%s0 + $0x18] sm:$0xff]
    %v21 = vld [vmem:[%s2] sm:$0xff]
    %v22 = vld [vmem:[%s2 + $0x8] sm:$0x1]
    %24 = vset.pattern.permute.xlu0 0
    %25 = vperm.xlu0 %24, %v21
    %v26 = vpop.permute.xlu0 %25
    %29 = vset.pattern.permute.xlu0 0
    %30 = vperm.xlu0 %29, %v22
    %v31 = vpop.permute.xlu0 %30
    %vm33 = vcmask 80896
    %v35 = vsel %vm33, %v15, 0
    %v38 = vsel %vm33, %v16, 0
    %v41 = vsel %vm33, %v17, 0
    %v44 = vsel %vm33, %v18, 0
    %v47 = vsel %vm33, %v19, 0
    %v50 = vsel %vm33, %v20, 0
    %52 = vmatpush.xpose.msra.mxu0 0.0
    %53 = vmatpush.xpose.msra.mxu0 0.0
    %54 = vmatpush.xpose.msra.mxu0 0.0
    %55 = vmatpush.xpose.msra.mxu0 0.0
    %56 = vmatpush.xpose.msra.mxu0 0.0
    %57 = vmatpush.xpose.msra.mxu0 0.0
    %58 = vmatpush.xpose.msra.mxu0 0.0
    %59 = vmatpush.xpose.msra.mxu0 0.0
    %60 = vmatpush.xpose.msra.mxu0 0.0
    %61 = vmatpush.xpose.msra.mxu0 0.0
    %62 = vmatpush.xpose.msra.mxu0 0.0
    %63 = vmatpush.xpose.msra.mxu0 0.0
    %64 = vmatpush.xpose.msra.mxu0 %v50
    %65 = vmatpush.xpose.msra.mxu0 %v47
    %66 = vmatpush.xpose.msra.mxu0 %v44
    %67 = vmatpush.xpose.msra.mxu0 %v41
    %68 = vmatmul.f32.gmra.mxu0 %v35
    %v69 = vpop.f32.mrf.mxu0
    %v70 = vadd.f32 %v26, %v69
    %71 = vmatmul.f32.gmra.mxu0 %v38
    %v72 = vpop.f32.mrf.mxu0
    %v73 = vadd.f32 %v31, %v72
    %74 = vdwg.mxu0
    %vm75 = vcmask 261120
    %76 = vst.msk [vmem:[#allocation2] sm:$0xff] %vm75, %v70
    %vm77 = vcmask 253952
    %78 = vst.msk [vmem:[#allocation2 + $0x8] sm:$0x1] %vm77, %v73
    // Predicated region
    $region14: #{tpu_custom_call.1} parent=1 // pred_check
      _
    $region15: #{tpu_custom_call.1} parent=1 // pred_check_branch
      %80 = sbr.rel (0) target = $region17
    $region16: #{tpu_custom_call.1} parent=1 // pred_region
      %82 = vsyncadd [#allocation3], 0
      %s83 = sshll.u32 [#allocation2], 4
      %s84 = int_to_ptr.vmem [resolvable:$true] %s83
      %s85 = sshll.u32 %s3, 4
      %s86 = int_to_ptr.hbm [resolvable:$true] %s85
      %91 = dma.vmem_to_hbm [thread:$0]  %s84, 256, %s86, [#allocation3], 128, 128, 8
    $region17: #{tpu_custom_call.1} parent=1 // pred_fallthru
      _
    // Predicated region
    $region18: #{tpu_custom_call.1} parent=1 // pred_check
      _
    $region19: #{tpu_custom_call.1} parent=1 // pred_check_branch
      %93 = sbr.rel (0) target = $region21
    $region20: #{tpu_custom_call.1} parent=1 // pred_region
      %95 = dma.done [#allocation3], 256
    $region21: #{tpu_custom_call.1} parent=1 // pred_fallthru
      _
    %96 = vsyncpa [#allocation3], 1

</llo_original>
